<compile_context>
chip_gen: v7x
topology: tpu7x:2x2x1
jax: 0.10.0
libtpu: 0.0.40
codegen_flags: <defaults>
</compile_context>

<pallas_src>
import jax
import jax.numpy as jnp
from jax.experimental import pallas as pl
from jax.experimental.pallas import tpu as pltpu


def _round_up(n, m):
    return ((n + m - 1) // m) * m


def fcdp_kernel(x_ref, w1_ref, b1_ref, w2_ref, b2_ref, w3_ref, b3_ref,
                scale_ref, bias_ref, out_ref):
    # x_ref: [input_dim, TB]  (batch on the lane axis -> lane-dense everywhere)
    x = x_ref[...]

    # input layer + relu : [H1, TB]
    h = jnp.dot(w1_ref[...], x, preferred_element_type=jnp.float32) + b1_ref[...]
    h = jnp.maximum(h, 0.0)

    # hidden layer + relu : [H2, TB]
    h = jnp.dot(w2_ref[...], h, preferred_element_type=jnp.float32) + b2_ref[...]
    h = jnp.maximum(h, 0.0)

    # output layer + tanh : [A_pad, TB]
    o = jnp.dot(w3_ref[...], h, preferred_element_type=jnp.float32) + b3_ref[...]
    o = jnp.tanh(o)

    # rescale from [-1, 1] to [env_min, env_max] as a single FMA
    out_ref[...] = o * scale_ref[...] + bias_ref[...]


def _choose_batch_tile(B, block_batch):
    """Pick a lane-dense batch tile (multiple of 128) and the padded batch."""
    B_128 = _round_up(max(B, 1), 128)
    bb = max(128, (int(block_batch) // 128) * 128)   # guard non-128-multiple input
    TB = min(bb, B_128)
    # If a single tile would cover the whole (padded) batch but there is enough
    # work for two tiles, halve it so grid >= 2 and both v7x TCs get a share.
    if TB == B_128 and B_128 >= 256:
        TB = max(128, (B_128 // 2 // 128) * 128)
    B_pad = _round_up(B, TB)
    return TB, B_pad


def fcdp_reference(x, params, env_min, env_max):
    """Pure-JAX reference matching the PyTorch forward (also the tiny-batch path)."""
    w1, b1, w2, b2, w3, b3 = params
    h = jnp.maximum(x @ w1.T + b1.T, 0.0)
    h = jnp.maximum(h @ w2.T + b2.T, 0.0)
    o = jnp.tanh(h @ w3.T + b3.T)
    return (o - (-1.0)) * (env_max.T - env_min.T) / 2.0 + env_min.T


def fcdp_forward(x, params, env_min, env_max, *, block_batch=16384,
                 use_pallas=None, x_feature_major=False):
    """x: [B, input_dim] f32 (or [input_dim, B] if x_feature_major).
    params: (W1,b1,W2,b2,W3,b3) with W:[out,in], b:[out,1] (PyTorch Linear layout).
    env_min/env_max: [A, 1] f32.  Returns [B, action_dim] f32."""
    w1, b1, w2, b2, w3, b3 = params
    if x_feature_major:
        input_dim, B = x.shape
    else:
        B, input_dim = x.shape
    H1 = w1.shape[0]
    H2 = w2.shape[0]
    A = w3.shape[0]

    if use_pallas is None:
        use_pallas = B >= 1024          # launch + repack dominate for tiny batches
    if not use_pallas:
        xb = x.T if x_feature_major else x
        return fcdp_reference(xb, params, env_min, env_max)

    # fold the tanh rescale into scale/bias (divisor is exactly 2 -> bit-exact)
    action_scale = (env_max - env_min) * 0.5   # [A, 1]
    action_bias = (env_max + env_min) * 0.5    # [A, 1]

    # pad the output row dim to a full sublane group (4 -> 8): unmasked stores
    A_pad = _round_up(A, 8)
    rp = A_pad - A
    w3p = jnp.pad(w3, ((0, rp), (0, 0)))
    b3p = jnp.pad(b3, ((0, rp), (0, 0)))
    scale_p = jnp.pad(action_scale, ((0, rp), (0, 0)))
    bias_p = jnp.pad(action_bias, ((0, rp), (0, 0)))

    # batch tile (multiple of 128, grid >= 2 when possible) and padded batch
    TB, B_pad = _choose_batch_tile(B, block_batch)

    # lane-dense layout: batch on the lane axis, single pad op (no zeros+scatter)
    x_t = x if x_feature_major else x.T
    if B_pad != B:
        x_t = jnp.pad(x_t, ((0, 0), (0, B_pad - B)))

    grid = (B_pad // TB,)

    def resident(shape):
        # weights / biases / rescale constants: same block every grid step,
        # DMA'd once and held in VMEM across the whole batch grid.
        return pl.BlockSpec(shape, lambda i: (0, 0))

    out_t = pl.pallas_call(
        fcdp_kernel,
        out_shape=jax.ShapeDtypeStruct((A_pad, B_pad), jnp.float32),
        grid_spec=pltpu.PrefetchScalarGridSpec(
            num_scalar_prefetch=0,
            grid=grid,
            in_specs=[
                pl.BlockSpec((input_dim, TB), lambda i: (0, i)),   # x tile
                resident((H1, input_dim)),                         # W1
                resident((H1, 1)),                                 # b1
                resident((H2, H1)),                                # W2
                resident((H2, 1)),                                 # b2
                resident((A_pad, H2)),                             # W3 (row-padded)
                resident((A_pad, 1)),                              # b3
                resident((A_pad, 1)),                              # action_scale
                resident((A_pad, 1)),                              # action_bias
            ],
            out_specs=pl.BlockSpec((A_pad, TB), lambda i: (0, i)),
        ),
        compiler_params=pltpu.CompilerParams(
            dimension_semantics=("parallel",),    # shard batch grid across TCs (v7x)
            vmem_limit_bytes=32 * 1024 * 1024,    # big TB also fits v5e's scoped VMEM
        ),
    )(x_t, w1, b1, w2, b2, w3p, b3p, scale_p, bias_p)

    # back to the PyTorch-facing [B, A] layout (cheap XLA op on a tiny array)
    return out_t[:A, :B].T


def init_params(key, input_dim, hidden_dims, action_dim):
    """Deterministic synthetic init, PyTorch-Linear layout: W [out,in], b [out,1]."""
    dims = (input_dim,) + tuple(hidden_dims) + (action_dim,)
    params = []
    for i in range(len(dims) - 1):
        fan_in, fan_out = dims[i], dims[i + 1]
        key, kw, kb = jax.random.split(key, 3)
        bound = 1.0 / jnp.sqrt(jnp.float32(fan_in))
        w = jax.random.uniform(kw, (fan_out, fan_in), jnp.float32, -bound, bound)
        b = jax.random.uniform(kb, (fan_out, 1), jnp.float32, -bound, bound)
        params.extend([w, b])
    return tuple(params)


if __name__ == "__main__":
    key = jax.random.PRNGKey(0)

    input_dim = 8
    hidden_dims = (32, 32)
    action_dim = 4

    # action bounds for a 4-dim continuous action space, shape [A, 1]
    env_min = jnp.array([-2.0, -1.0, -0.5, -3.0], dtype=jnp.float32).reshape(action_dim, 1)
    env_max = jnp.array([2.0, 1.0, 0.5, 3.0], dtype=jnp.float32).reshape(action_dim, 1)

    key, kp, kx1, kx2 = jax.random.split(key, 4)
    params = init_params(kp, input_dim, hidden_dims, action_dim)

    # 1) small batch (forced through the Pallas kernel, single tile grid)
    batch = 2
    x_small = jax.random.normal(kx1, (batch, input_dim), dtype=jnp.float32)
    out_small = fcdp_forward(x_small, params, env_min, env_max, use_pallas=True)
    jax.block_until_ready(out_small)
    ref_small = fcdp_reference(x_small, params, env_min, env_max)
    assert out_small.shape == (batch, action_dim)
    assert bool(jnp.allclose(out_small, ref_small, atol=1e-5, rtol=1e-5))
    assert bool(jnp.all(out_small >= env_min.T - 1e-5))
    assert bool(jnp.all(out_small <= env_max.T + 1e-5))

    # 2) larger batch exercising a multi-tile grid (resident weights, grid >= 2)
    batch2 = 300
    x_big = jax.random.normal(kx2, (batch2, input_dim), dtype=jnp.float32)
    out_big = fcdp_forward(x_big, params, env_min, env_max, use_pallas=True)
    jax.block_until_ready(out_big)
    ref_big = fcdp_reference(x_big, params, env_min, env_max)
    assert out_big.shape == (batch2, action_dim)
    assert bool(jnp.allclose(out_big, ref_big, atol=1e-5, rtol=1e-5))
    assert bool(jnp.all(out_big >= env_min.T - 1e-5))
    assert bool(jnp.all(out_big <= env_max.T + 1e-5))

    print("KERNEL_OK")
</pallas_src>

<mosaic_0001>
module attributes {stable_mosaic.version = 11 : i64} {
  func.func @fcdp_kernel(%arg0: i32, %arg1: memref<8x128xf32, #tpu.memory_space<vmem>>, %arg2: memref<32x8xf32, #tpu.memory_space<vmem>>, %arg3: memref<32x1xf32, #tpu.memory_space<vmem>>, %arg4: memref<32x32xf32, #tpu.memory_space<vmem>>, %arg5: memref<32x1xf32, #tpu.memory_space<vmem>>, %arg6: memref<8x32xf32, #tpu.memory_space<vmem>>, %arg7: memref<8x1xf32, #tpu.memory_space<vmem>>, %arg8: memref<8x1xf32, #tpu.memory_space<vmem>>, %arg9: memref<8x1xf32, #tpu.memory_space<vmem>>, %arg10: memref<8x128xf32, #tpu.memory_space<vmem>>) attributes {dimension_semantics = [#tpu.dimension_semantics<parallel>], iteration_bounds = array<i64: 1>, scalar_prefetch = 0 : i64, scratch_operands = 0 : i64, tpu.core_type = #tpu.core_type<tc>, window_params = [{transform_indices = @transform_0, window_bounds = array<i64: 8, 128>}, {pipeline_mode = #tpu.pipeline_mode<synchronous>, transform_indices = @transform_1, window_bounds = array<i64: 32, 8>}, {pipeline_mode = #tpu.pipeline_mode<synchronous>, transform_indices = @transform_2, window_bounds = array<i64: 32, 1>}, {pipeline_mode = #tpu.pipeline_mode<synchronous>, transform_indices = @transform_3, window_bounds = array<i64: 32, 32>}, {pipeline_mode = #tpu.pipeline_mode<synchronous>, transform_indices = @transform_4, window_bounds = array<i64: 32, 1>}, {pipeline_mode = #tpu.pipeline_mode<synchronous>, transform_indices = @transform_5, window_bounds = array<i64: 8, 32>}, {pipeline_mode = #tpu.pipeline_mode<synchronous>, transform_indices = @transform_6, window_bounds = array<i64: 8, 1>}, {pipeline_mode = #tpu.pipeline_mode<synchronous>, transform_indices = @transform_7, window_bounds = array<i64: 8, 1>}, {pipeline_mode = #tpu.pipeline_mode<synchronous>, transform_indices = @transform_8, window_bounds = array<i64: 8, 1>}, {transform_indices = @transform_9, window_bounds = array<i64: 8, 128>}]} {
    %c0 = arith.constant 0 : index
    %c0_0 = arith.constant 0 : index
    %0 = vector.load %arg1[%c0, %c0_0] : memref<8x128xf32, #tpu.memory_space<vmem>>, vector<8x128xf32>
    %c0_1 = arith.constant 0 : index
    %c0_2 = arith.constant 0 : index
    %1 = vector.load %arg2[%c0_1, %c0_2] : memref<32x8xf32, #tpu.memory_space<vmem>>, vector<32x8xf32>
    %cst = arith.constant dense<0.000000e+00> : vector<32x128xf32>
    %2 = tpu.matmul %1, %0, %cst {dimension_numbers = #tpu.dot_dimension_numbers<[1], [0], [0], [1], [0, 0, 1, 1], [], []>} : vector<32x8xf32>, vector<8x128xf32>, vector<32x128xf32> -> vector<32x128xf32>
    %c0_3 = arith.constant 0 : index
    %c0_4 = arith.constant 0 : index
    %3 = vector.load %arg3[%c0_3, %c0_4] : memref<32x1xf32, #tpu.memory_space<vmem>>, vector<32x1xf32>
    %4 = vector.broadcast %3 : vector<32x1xf32> to vector<32x128xf32>
    %5 = arith.addf %2, %4 : vector<32x128xf32>
    %cst_5 = arith.constant 0.000000e+00 : f32
    %6 = vector.broadcast %cst_5 : f32 to vector<32x128xf32>
    %7 = arith.maximumf %5, %6 : vector<32x128xf32>
    %c0_6 = arith.constant 0 : index
    %c0_7 = arith.constant 0 : index
    %8 = vector.load %arg4[%c0_6, %c0_7] : memref<32x32xf32, #tpu.memory_space<vmem>>, vector<32x32xf32>
    %cst_8 = arith.constant dense<0.000000e+00> : vector<32x128xf32>
    %9 = tpu.matmul %8, %7, %cst_8 {dimension_numbers = #tpu.dot_dimension_numbers<[1], [0], [0], [1], [0, 0, 1, 1], [], []>} : vector<32x32xf32>, vector<32x128xf32>, vector<32x128xf32> -> vector<32x128xf32>
    %c0_9 = arith.constant 0 : index
    %c0_10 = arith.constant 0 : index
    %10 = vector.load %arg5[%c0_9, %c0_10] : memref<32x1xf32, #tpu.memory_space<vmem>>, vector<32x1xf32>
    %11 = vector.broadcast %10 : vector<32x1xf32> to vector<32x128xf32>
    %12 = arith.addf %9, %11 : vector<32x128xf32>
    %cst_11 = arith.constant 0.000000e+00 : f32
    %13 = vector.broadcast %cst_11 : f32 to vector<32x128xf32>
    %14 = arith.maximumf %12, %13 : vector<32x128xf32>
    %c0_12 = arith.constant 0 : index
    %c0_13 = arith.constant 0 : index
    %15 = vector.load %arg6[%c0_12, %c0_13] : memref<8x32xf32, #tpu.memory_space<vmem>>, vector<8x32xf32>
    %cst_14 = arith.constant dense<0.000000e+00> : vector<8x128xf32>
    %16 = tpu.matmul %15, %14, %cst_14 {dimension_numbers = #tpu.dot_dimension_numbers<[1], [0], [0], [1], [0, 0, 1, 1], [], []>} : vector<8x32xf32>, vector<32x128xf32>, vector<8x128xf32> -> vector<8x128xf32>
    %c0_15 = arith.constant 0 : index
    %c0_16 = arith.constant 0 : index
    %17 = vector.load %arg7[%c0_15, %c0_16] : memref<8x1xf32, #tpu.memory_space<vmem>>, vector<8x1xf32>
    %18 = vector.broadcast %17 : vector<8x1xf32> to vector<8x128xf32>
    %19 = arith.addf %16, %18 : vector<8x128xf32>
    %20 = math.tanh %19 : vector<8x128xf32>
    %c0_17 = arith.constant 0 : index
    %c0_18 = arith.constant 0 : index
    %21 = vector.load %arg8[%c0_17, %c0_18] : memref<8x1xf32, #tpu.memory_space<vmem>>, vector<8x1xf32>
    %22 = vector.broadcast %21 : vector<8x1xf32> to vector<8x128xf32>
    %23 = arith.mulf %20, %22 : vector<8x128xf32>
    %c0_19 = arith.constant 0 : index
    %c0_20 = arith.constant 0 : index
    %24 = vector.load %arg9[%c0_19, %c0_20] : memref<8x1xf32, #tpu.memory_space<vmem>>, vector<8x1xf32>
    %25 = vector.broadcast %24 : vector<8x1xf32> to vector<8x128xf32>
    %26 = arith.addf %23, %25 : vector<8x128xf32>
    %c0_21 = arith.constant 0 : index
    %c0_22 = arith.constant 0 : index
    %27 = vector.load %arg10[%c0_21, %c0_22] : memref<8x128xf32, #tpu.memory_space<vmem>>, vector<8x128xf32>
    tpu.vector_store %arg10[%c0_21, %c0_22], %26 {strides = array<i32>} : memref<8x128xf32, #tpu.memory_space<vmem>>, vector<8x128xf32>,
    return
  }
  func.func @transform_0(%arg0: i32) -> (i32, i32) {
    %c0_i32 = arith.constant 0 : i32
    %c0_i32_0 = arith.constant 0 : i32
    return %c0_i32, %arg0 : i32, i32
  }
  func.func @transform_1(%arg0: i32) -> (i32, i32) {
    %c0_i32 = arith.constant 0 : i32
    %c0_i32_0 = arith.constant 0 : i32
    %c0_i32_1 = arith.constant 0 : i32
    return %c0_i32, %c0_i32_0 : i32, i32
  }
  func.func @transform_2(%arg0: i32) -> (i32, i32) {
    %c0_i32 = arith.constant 0 : i32
    %c0_i32_0 = arith.constant 0 : i32
    %c0_i32_1 = arith.constant 0 : i32
    return %c0_i32, %c0_i32_0 : i32, i32
  }
  func.func @transform_3(%arg0: i32) -> (i32, i32) {
    %c0_i32 = arith.constant 0 : i32
    %c0_i32_0 = arith.constant 0 : i32
    %c0_i32_1 = arith.constant 0 : i32
    return %c0_i32, %c0_i32_0 : i32, i32
  }
  func.func @transform_4(%arg0: i32) -> (i32, i32) {
    %c0_i32 = arith.constant 0 : i32
    %c0_i32_0 = arith.constant 0 : i32
    %c0_i32_1 = arith.constant 0 : i32
    return %c0_i32, %c0_i32_0 : i32, i32
  }
  func.func @transform_5(%arg0: i32) -> (i32, i32) {
    %c0_i32 = arith.constant 0 : i32
    %c0_i32_0 = arith.constant 0 : i32
    %c0_i32_1 = arith.constant 0 : i32
    return %c0_i32, %c0_i32_0 : i32, i32
  }
  func.func @transform_6(%arg0: i32) -> (i32, i32) {
    %c0_i32 = arith.constant 0 : i32
    %c0_i32_0 = arith.constant 0 : i32
    %c0_i32_1 = arith.constant 0 : i32
    return %c0_i32, %c0_i32_0 : i32, i32
  }
  func.func @transform_7(%arg0: i32) -> (i32, i32) {
    %c0_i32 = arith.constant 0 : i32
    %c0_i32_0 = arith.constant 0 : i32
    %c0_i32_1 = arith.constant 0 : i32
    return %c0_i32, %c0_i32_0 : i32, i32
  }
  func.func @transform_8(%arg0: i32) -> (i32, i32) {
    %c0_i32 = arith.constant 0 : i32
    %c0_i32_0 = arith.constant 0 : i32
    %c0_i32_1 = arith.constant 0 : i32
    return %c0_i32, %c0_i32_0 : i32, i32
  }
  func.func @transform_9(%arg0: i32) -> (i32, i32) {
    %c0_i32 = arith.constant 0 : i32
    %c0_i32_0 = arith.constant 0 : i32
    return %c0_i32, %arg0 : i32, i32
  }
}

</mosaic_0001>

<llo_original>
// kernel: tpu_custom_call.1
$region0: #{tpu_custom_call.1}
  #allocation0 [shape = 'u32[]', space=smem, size = 0x4, offset = 0x4, fixed_abs, tag = 'smem constant byte address 0x4 - core index']
  #allocation1 [shape = 'u32[144,128]{1,0:T(1,128)}', space=vmem, size = 0x12000, scoped, tag = 'internal scratch']
  %s0 = inlined_call_operand.vmem [shape: f32[8,128], index: 0, kind: input, shape index: {}]
  %s1 = inlined_call_operand.vmem [shape: f32[32,8], index: 1, kind: input, shape index: {}]
  %s2 = inlined_call_operand.vmem [shape: f32[32,1], index: 2, kind: input, shape index: {}]
  %s3 = inlined_call_operand.vmem [shape: f32[32,32], index: 3, kind: input, shape index: {}]
  %s4 = inlined_call_operand.vmem [shape: f32[32,1], index: 4, kind: input, shape index: {}]
  %s5 = inlined_call_operand.vmem [shape: f32[8,32], index: 5, kind: input, shape index: {}]
  %s6 = inlined_call_operand.vmem [shape: f32[8,1], index: 6, kind: input, shape index: {}]
  %s7 = inlined_call_operand.vmem [shape: f32[8,1], index: 7, kind: input, shape index: {}]
  %s8 = inlined_call_operand.vmem [shape: f32[8,1], index: 8, kind: input, shape index: {}]
  %s9 = inlined_call_operand.hbm [shape: f32[8,128], index: 9, kind: output, shape index: {}]
  %s10 = sld [smem:[#allocation0]]
  $region46: #{tpu_custom_call.1} parent=0
    _
  %s12 = ssub.s32 1, %s10
  %s13 = scalar_select 0, %s12, %s10
  $region1: #{tpu_custom_call.1} parent=0
    #allocation2 [shape = 'u8[4096]{0}', space=vmem, size = 0x1000, scoped, tag = 'output window, operand 0, single buffered']
    #allocation3 [shape = 's32[1]{0}', space=sflag, size = 0x4, scoped, tag = 'scoped memory for tpu_custom_call.1']
    %14 = vsyncpa [#allocation3], 0
    // Predicated region
    $region2: #{tpu_custom_call.1} parent=1 // pred_check
      _
    $region3: #{tpu_custom_call.1} parent=1 // pred_check_branch
      %16 = sbr.rel (0) target = $region5
    $region4: #{tpu_custom_call.1} parent=1 // pred_region
      _
    $region5: #{tpu_custom_call.1} parent=1 // pred_fallthru
      _
    // Predicated region
    $region6: #{tpu_custom_call.1} parent=1 // pred_check
      _
    $region7: #{tpu_custom_call.1} parent=1 // pred_check_branch
      %18 = sbr.rel (0) target = $region9
    $region8: #{tpu_custom_call.1} parent=1 // pred_region
      _
    $region9: #{tpu_custom_call.1} parent=1 // pred_fallthru
      _
    // Predicated region
    $region10: #{tpu_custom_call.1} parent=1 // pred_check
      _
    $region11: #{tpu_custom_call.1} parent=1 // pred_check_branch
      %20 = sbr.rel (0) target = $region13
    $region12: #{tpu_custom_call.1} parent=1 // pred_region
      _
    $region13: #{tpu_custom_call.1} parent=1 // pred_fallthru
      _
    // Predicated region
    $region14: #{tpu_custom_call.1} parent=1 // pred_check
      _
    $region15: #{tpu_custom_call.1} parent=1 // pred_check_branch
      %22 = sbr.rel (0) target = $region17
    $region16: #{tpu_custom_call.1} parent=1 // pred_region
      _
    $region17: #{tpu_custom_call.1} parent=1 // pred_fallthru
      _
    // Predicated region
    $region18: #{tpu_custom_call.1} parent=1 // pred_check
      _
    $region19: #{tpu_custom_call.1} parent=1 // pred_check_branch
      %24 = sbr.rel (0) target = $region21
    $region20: #{tpu_custom_call.1} parent=1 // pred_region
      _
    $region21: #{tpu_custom_call.1} parent=1 // pred_fallthru
      _
    // Predicated region
    $region22: #{tpu_custom_call.1} parent=1 // pred_check
      _
    $region23: #{tpu_custom_call.1} parent=1 // pred_check_branch
      %26 = sbr.rel (0) target = $region25
    $region24: #{tpu_custom_call.1} parent=1 // pred_region
      _
    $region25: #{tpu_custom_call.1} parent=1 // pred_fallthru
      _
    // Predicated region
    $region26: #{tpu_custom_call.1} parent=1 // pred_check
      _
    $region27: #{tpu_custom_call.1} parent=1 // pred_check_branch
      %28 = sbr.rel (0) target = $region29
    $region28: #{tpu_custom_call.1} parent=1 // pred_region
      _
    $region29: #{tpu_custom_call.1} parent=1 // pred_fallthru
      _
    // Predicated region
    $region30: #{tpu_custom_call.1} parent=1 // pred_check
      _
    $region31: #{tpu_custom_call.1} parent=1 // pred_check_branch
      %30 = sbr.rel (0) target = $region33
    $region32: #{tpu_custom_call.1} parent=1 // pred_region
      _
    $region33: #{tpu_custom_call.1} parent=1 // pred_fallthru
      _
    // Predicated region
    $region34: #{tpu_custom_call.1} parent=1 // pred_check
      _
    $region35: #{tpu_custom_call.1} parent=1 // pred_check_branch
      %32 = sbr.rel (0) target = $region37
    $region36: #{tpu_custom_call.1} parent=1 // pred_region
      _
    $region37: #{tpu_custom_call.1} parent=1 // pred_fallthru
      _
    %v33 = vld [vmem:[%s0] sm:$0xff]
    %v34 = vld [vmem:[%s1] sm:$0xff]
    %v35 = vld [vmem:[%s1 + $0x8] sm:$0xff]
    %v36 = vld [vmem:[%s1 + $0x10] sm:$0xff]
    %v37 = vld [vmem:[%s1 + $0x18] sm:$0xff]
    %v38 = vld [vmem:[%s2] sm:$0xff]
    %v39 = vld [vmem:[%s2 + $0x8] sm:$0xff]
    %v40 = vld [vmem:[%s2 + $0x10] sm:$0xff]
    %v41 = vld [vmem:[%s2 + $0x18] sm:$0xff]
    %43 = vset.pattern.permute.xlu0 0
    %44 = vperm.xlu0 %43, %v38
    %v45 = vpop.permute.xlu0 %44
    %48 = vset.pattern.permute.xlu0 0
    %49 = vperm.xlu0 %48, %v39
    %v50 = vpop.permute.xlu0 %49
    %53 = vset.pattern.permute.xlu0 0
    %54 = vperm.xlu0 %53, %v40
    %v55 = vpop.permute.xlu0 %54
    %58 = vset.pattern.permute.xlu0 0
    %59 = vperm.xlu0 %58, %v41
    %v60 = vpop.permute.xlu0 %59
    %vm62 = vcmask 64512
    %v64 = vsel %vm62, %v34, 0
    %v67 = vsel %vm62, %v35, 0
    %v70 = vsel %vm62, %v36, 0
    %v73 = vsel %vm62, %v37, 0
    %75 = vmatprep.subr.mxu0 0.0
    %76 = vmatpush1.msra.mxu0 %v33
    %77 = vmatprep.subr.mxu0 0.0
    %78 = vmatpush1.msra.mxu0 0.0
    %79 = vmatprep.subr.mxu0 0.0
    %80 = vmatpush1.msra.mxu0 0.0
    %81 = vmatprep.subr.mxu0 0.0
    %82 = vmatpush1.msra.mxu0 0.0
    %83 = vmatprep.subr.mxu0 0.0
    %84 = vmatpush1.msra.mxu0 0.0
    %85 = vmatprep.subr.mxu0 0.0
    %86 = vmatpush1.msra.mxu0 0.0
    %87 = vmatprep.subr.mxu0 0.0
    %88 = vmatpush1.msra.mxu0 0.0
    %89 = vmatprep.subr.mxu0 0.0
    %90 = vmatpush1.msra.mxu0 0.0
    %91 = vmatprep.subr.mxu0 0.0
    %92 = vmatpush1.msra.mxu0 0.0
    %93 = vmatprep.subr.mxu0 0.0
    %94 = vmatpush1.msra.mxu0 0.0
    %95 = vmatprep.subr.mxu0 0.0
    %96 = vmatpush1.msra.mxu0 0.0
    %97 = vmatprep.subr.mxu0 0.0
    %98 = vmatpush1.msra.mxu0 0.0
    %99 = vmatprep.subr.mxu0 0.0
    %100 = vmatpush1.msra.mxu0 0.0
    %101 = vmatprep.subr.mxu0 0.0
    %102 = vmatpush1.msra.mxu0 0.0
    %103 = vmatprep.subr.mxu0 0.0
    %104 = vmatpush1.msra.mxu0 0.0
    %105 = vmatprep.subr.mxu0 0.0
    %106 = vmatpush1.msra.mxu0 0.0
    %107 = vmatprep.subr.mxu0 0.0
    %108 = vmatpush1.msra.mxu0 0.0
    %109 = vmatprep.subr.mxu0 0.0
    %110 = vmatpush1.msra.mxu0 0.0
    %111 = vmatprep.subr.mxu0 0.0
    %112 = vmatpush1.msra.mxu0 0.0
    %113 = vmatprep.subr.mxu0 0.0
    %114 = vmatpush1.msra.mxu0 0.0
    %115 = vmatprep.subr.mxu0 0.0
    %116 = vmatpush1.msra.mxu0 0.0
    %117 = vmatprep.subr.mxu0 0.0
    %118 = vmatpush1.msra.mxu0 0.0
    %119 = vmatprep.subr.mxu0 0.0
    %120 = vmatpush1.msra.mxu0 0.0
    %121 = vmatprep.subr.mxu0 0.0
    %122 = vmatpush1.msra.mxu0 0.0
    %123 = vmatprep.subr.mxu0 0.0
    %124 = vmatpush1.msra.mxu0 0.0
    %125 = vmatprep.subr.mxu0 0.0
    %126 = vmatpush1.msra.mxu0 0.0
    %127 = vmatprep.subr.mxu0 0.0
    %128 = vmatpush1.msra.mxu0 0.0
    %129 = vmatprep.subr.mxu0 0.0
    %130 = vmatpush1.msra.mxu0 0.0
    %131 = vmatprep.subr.mxu0 0.0
    %132 = vmatpush1.msra.mxu0 0.0
    %133 = vmatprep.subr.mxu0 0.0
    %134 = vmatpush1.msra.mxu0 0.0
    %135 = vmatprep.subr.mxu0 0.0
    %136 = vmatpush1.msra.mxu0 0.0
    %137 = vmatprep.subr.mxu0 0.0
    %138 = vmatpush1.msra.mxu0 0.0
    %139 = vmatprep.mubr.f32.mxu0 0.0
    %140 = vmatmul.mubr.f32.gmra.mrb[0].mxu0 %v64
    %v141 = vpop.f32.mrb[0].mxu0
    %v142 = vadd.f32 %v45, %v141
    %v143 = vpop.f32.mrb[0].mxu0
    %144 = vmatprep.mubr.f32.mxu0 0.0
    %145 = vmatmul.mubr.f32.gmra.mrb[0].mxu0 %v67
    %v146 = vpop.f32.mrb[0].mxu0
    %v147 = vadd.f32 %v50, %v146
    %v148 = vpop.f32.mrb[0].mxu0
    %149 = vmatprep.mubr.f32.mxu0 0.0
    %150 = vmatmul.mubr.f32.gmra.mrb[0].mxu0 %v70
    %v151 = vpop.f32.mrb[0].mxu0
    %v152 = vadd.f32 %v55, %v151
    %v153 = vpop.f32.mrb[0].mxu0
    %154 = vmatprep.mubr.f32.mxu0 0.0
    %155 = vmatmul.mubr.f32.gmra.mrb[0].mxu0 %v73
    %v156 = vpop.f32.mrb[0].mxu0
    %v157 = vadd.f32 %v60, %v156
    %v158 = vpop.f32.mrb[0].mxu0
    %159 = vdwg.mxu0
    %v160 = vmax.f32 %v142, 0.0
    %v161 = vmax.f32 %v147, 0.0
    %v162 = vmax.f32 %v152, 0.0
    %v163 = vmax.f32 %v157, 0.0
    %v164 = vld [vmem:[%s3] sm:$0xff]
    %v165 = vld [vmem:[%s3 + $0x8] sm:$0xff]
    %v166 = vld [vmem:[%s3 + $0x10] sm:$0xff]
    %v167 = vld [vmem:[%s3 + $0x18] sm:$0xff]
    %v168 = vld [vmem:[%s4] sm:$0xff]
    %v169 = vld [vmem:[%s4 + $0x8] sm:$0xff]
    %v170 = vld [vmem:[%s4 + $0x10] sm:$0xff]
    %v171 = vld [vmem:[%s4 + $0x18] sm:$0xff]
    %173 = vset.pattern.permute.xlu0 0
    %174 = vperm.xlu0 %173, %v168
    %v175 = vpop.permute.xlu0 %174
    %178 = vset.pattern.permute.xlu0 0
    %179 = vperm.xlu0 %178, %v169
    %v180 = vpop.permute.xlu0 %179
    %183 = vset.pattern.permute.xlu0 0
    %184 = vperm.xlu0 %183, %v170
    %v185 = vpop.permute.xlu0 %184
    %188 = vset.pattern.permute.xlu0 0
    %189 = vperm.xlu0 %188, %v171
    %v190 = vpop.permute.xlu0 %189
    %vm192 = vcmask 261120
    %v194 = vsel %vm192, %v164, 0
    %v197 = vsel %vm192, %v165, 0
    %v200 = vsel %vm192, %v166, 0
    %v203 = vsel %vm192, %v167, 0
    %205 = vmatprep.subr.mxu0 0.0
    %206 = vmatpush1.msra.mxu0 %v160
    %207 = vmatprep.subr.mxu0 0.0
    %208 = vmatpush1.msra.mxu0 %v161
    %209 = vmatprep.subr.mxu0 0.0
    %210 = vmatpush1.msra.mxu0 %v162
    %211 = vmatprep.subr.mxu0 0.0
    %212 = vmatpush1.msra.mxu0 %v163
    %213 = vmatprep.subr.mxu0 0.0
    %214 = vmatpush1.msra.mxu0 0.0
    %215 = vmatprep.subr.mxu0 0.0
    %216 = vmatpush1.msra.mxu0 0.0
    %217 = vmatprep.subr.mxu0 0.0
    %218 = vmatpush1.msra.mxu0 0.0
    %219 = vmatprep.subr.mxu0 0.0
    %220 = vmatpush1.msra.mxu0 0.0
    %221 = vmatprep.subr.mxu0 0.0
    %222 = vmatpush1.msra.mxu0 0.0
    %223 = vmatprep.subr.mxu0 0.0
    %224 = vmatpush1.msra.mxu0 0.0
    %225 = vmatprep.subr.mxu0 0.0
    %226 = vmatpush1.msra.mxu0 0.0
    %227 = vmatprep.subr.mxu0 0.0
    %228 = vmatpush1.msra.mxu0 0.0
    %229 = vmatprep.subr.mxu0 0.0
    %230 = vmatpush1.msra.mxu0 0.0
    %231 = vmatprep.subr.mxu0 0.0
    %232 = vmatpush1.msra.mxu0 0.0
    %233 = vmatprep.subr.mxu0 0.0
    %234 = vmatpush1.msra.mxu0 0.0
    %235 = vmatprep.subr.mxu0 0.0
    %236 = vmatpush1.msra.mxu0 0.0
    %237 = vmatprep.subr.mxu0 0.0
    %238 = vmatpush1.msra.mxu0 0.0
    %239 = vmatprep.subr.mxu0 0.0
    %240 = vmatpush1.msra.mxu0 0.0
    %241 = vmatprep.subr.mxu0 0.0
    %242 = vmatpush1.msra.mxu0 0.0
    %243 = vmatprep.subr.mxu0 0.0
    %244 = vmatpush1.msra.mxu0 0.0
    %245 = vmatprep.subr.mxu0 0.0
    %246 = vmatpush1.msra.mxu0 0.0
    %247 = vmatprep.subr.mxu0 0.0
    %248 = vmatpush1.msra.mxu0 0.0
    %249 = vmatprep.subr.mxu0 0.0
    %250 = vmatpush1.msra.mxu0 0.0
    %251 = vmatprep.subr.mxu0 0.0
    %252 = vmatpush1.msra.mxu0 0.0
    %253 = vmatprep.subr.mxu0 0.0
    %254 = vmatpush1.msra.mxu0 0.0
    %255 = vmatprep.subr.mxu0 0.0
    %256 = vmatpush1.msra.mxu0 0.0
    %257 = vmatprep.subr.mxu0 0.0
    %258 = vmatpush1.msra.mxu0 0.0
    %259 = vmatprep.subr.mxu0 0.0
    %260 = vmatpush1.msra.mxu0 0.0
    %261 = vmatprep.subr.mxu0 0.0
    %262 = vmatpush1.msra.mxu0 0.0
    %263 = vmatprep.subr.mxu0 0.0
    %264 = vmatpush1.msra.mxu0 0.0
    %265 = vmatprep.subr.mxu0 0.0
    %266 = vmatpush1.msra.mxu0 0.0
    %267 = vmatprep.subr.mxu0 0.0
    %268 = vmatpush1.msra.mxu0 0.0
    %269 = vmatprep.mubr.f32.mxu0 0.0
    %270 = vmatmul.mubr.f32.gmra.mrb[0].mxu0 %v194
    %v271 = vpop.f32.mrb[0].mxu0
    %v272 = vadd.f32 %v175, %v271
    %v273 = vpop.f32.mrb[0].mxu0
    %274 = vmatprep.mubr.f32.mxu0 0.0
    %275 = vmatmul.mubr.f32.gmra.mrb[0].mxu0 %v197
    %v276 = vpop.f32.mrb[0].mxu0
    %v277 = vadd.f32 %v180, %v276
    %v278 = vpop.f32.mrb[0].mxu0
    %279 = vmatprep.mubr.f32.mxu0 0.0
    %280 = vmatmul.mubr.f32.gmra.mrb[0].mxu0 %v200
    %v281 = vpop.f32.mrb[0].mxu0
    %v282 = vadd.f32 %v185, %v281
    %v283 = vpop.f32.mrb[0].mxu0
    %284 = vmatprep.mubr.f32.mxu0 0.0
    %285 = vmatmul.mubr.f32.gmra.mrb[0].mxu0 %v203
    %v286 = vpop.f32.mrb[0].mxu0
    %v287 = vadd.f32 %v190, %v286
    %v288 = vpop.f32.mrb[0].mxu0
    %289 = vdwg.mxu0
    %v290 = vmax.f32 %v272, 0.0
    %v291 = vmax.f32 %v277, 0.0
    %v292 = vmax.f32 %v282, 0.0
    %v293 = vmax.f32 %v287, 0.0
    %v294 = vld [vmem:[%s5] sm:$0xff]
    %v295 = vld [vmem:[%s6] sm:$0xff]
    %297 = vset.pattern.permute.xlu0 0
    %298 = vperm.xlu0 %297, %v295
    %v299 = vpop.permute.xlu0 %298
    %v302 = vsel %vm192, %v294, 0
    %304 = vmatprep.subr.mxu0 0.0
    %305 = vmatpush1.msra.mxu0 %v290
    %306 = vmatprep.subr.mxu0 0.0
    %307 = vmatpush1.msra.mxu0 %v291
    %308 = vmatprep.subr.mxu0 0.0
    %309 = vmatpush1.msra.mxu0 %v292
    %310 = vmatprep.subr.mxu0 0.0
    %311 = vmatpush1.msra.mxu0 %v293
    %312 = vmatprep.subr.mxu0 0.0
    %313 = vmatpush1.msra.mxu0 0.0
    %314 = vmatprep.subr.mxu0 0.0
    %315 = vmatpush1.msra.mxu0 0.0
    %316 = vmatprep.subr.mxu0 0.0
    %317 = vmatpush1.msra.mxu0 0.0
    %318 = vmatprep.subr.mxu0 0.0
    %319 = vmatpush1.msra.mxu0 0.0
    %320 = vmatprep.subr.mxu0 0.0
    %321 = vmatpush1.msra.mxu0 0.0
    %322 = vmatprep.subr.mxu0 0.0
    %323 = vmatpush1.msra.mxu0 0.0
    %324 = vmatprep.subr.mxu0 0.0
    %325 = vmatpush1.msra.mxu0 0.0
    %326 = vmatprep.subr.mxu0 0.0
    %327 = vmatpush1.msra.mxu0 0.0
    %328 = vmatprep.subr.mxu0 0.0
    %329 = vmatpush1.msra.mxu0 0.0
    %330 = vmatprep.subr.mxu0 0.0
    %331 = vmatpush1.msra.mxu0 0.0
    %332 = vmatprep.subr.mxu0 0.0
    %333 = vmatpush1.msra.mxu0 0.0
    %334 = vmatprep.subr.mxu0 0.0
    %335 = vmatpush1.msra.mxu0 0.0
    %336 = vmatprep.subr.mxu0 0.0
    %337 = vmatpush1.msra.mxu0 0.0
    %338 = vmatprep.subr.mxu0 0.0
    %339 = vmatpush1.msra.mxu0 0.0
    %340 = vmatprep.subr.mxu0 0.0
    %341 = vmatpush1.msra.mxu0 0.0
    %342 = vmatprep.subr.mxu0 0.0
    %343 = vmatpush1.msra.mxu0 0.0
    %344 = vmatprep.subr.mxu0 0.0
    %345 = vmatpush1.msra.mxu0 0.0
    %346 = vmatprep.subr.mxu0 0.0
    %347 = vmatpush1.msra.mxu0 0.0
    %348 = vmatprep.subr.mxu0 0.0
    %349 = vmatpush1.msra.mxu0 0.0
    %350 = vmatprep.subr.mxu0 0.0
    %351 = vmatpush1.msra.mxu0 0.0
    %352 = vmatprep.subr.mxu0 0.0
    %353 = vmatpush1.msra.mxu0 0.0
    %354 = vmatprep.subr.mxu0 0.0
    %355 = vmatpush1.msra.mxu0 0.0
    %356 = vmatprep.subr.mxu0 0.0
    %357 = vmatpush1.msra.mxu0 0.0
    %358 = vmatprep.subr.mxu0 0.0
    %359 = vmatpush1.msra.mxu0 0.0
    %360 = vmatprep.subr.mxu0 0.0
    %361 = vmatpush1.msra.mxu0 0.0
    %362 = vmatprep.subr.mxu0 0.0
    %363 = vmatpush1.msra.mxu0 0.0
    %364 = vmatprep.subr.mxu0 0.0
    %365 = vmatpush1.msra.mxu0 0.0
    %366 = vmatprep.subr.mxu0 0.0
    %367 = vmatpush1.msra.mxu0 0.0
    %368 = vmatprep.mubr.f32.mxu0 0.0
    %369 = vmatmul.mubr.f32.gmra.mrb[0].mxu0 %v302
    %v370 = vpop.f32.mrb[0].mxu0
    %v371 = vadd.f32 %v299, %v370
    %v372 = vpop.f32.mrb[0].mxu0
    %373 = vdwg.mxu0
    %v374 = vtanh.pop %v371
    %v375 = vld [vmem:[%s7] sm:$0xff]
    %377 = vset.pattern.permute.xlu0 0
    %378 = vperm.xlu0 %377, %v375
    %v379 = vpop.permute.xlu0 %378
    %v381 = vmul.f32 %v374, %v379
    %v382 = vld [vmem:[%s8] sm:$0xff]
    %384 = vset.pattern.permute.xlu0 0
    %385 = vperm.xlu0 %384, %v382
    %v386 = vpop.permute.xlu0 %385
    %v388 = vadd.f32 %v381, %v386
    %389 = vst [vmem:[#allocation2] sm:$0xff] %v388
    // Predicated region
    $region38: #{tpu_custom_call.1} parent=1 // pred_check
      _
    $region39: #{tpu_custom_call.1} parent=1 // pred_check_branch
      %391 = sbr.rel (0) target = $region41
    $region40: #{tpu_custom_call.1} parent=1 // pred_region
      %s393 = ssub.s32 128, 128
      %394 = vsyncadd [#allocation3], %s393
      %s396 = sshll.u32 [#allocation2], 4
      %s397 = int_to_ptr.vmem [resolvable:$true] %s396
      %399 = dma.vmem_to_hbm [thread:$0]  %s397, 128, %s9, [#allocation3]
    $region41: #{tpu_custom_call.1} parent=1 // pred_fallthru
      _
    // Predicated region
    $region42: #{tpu_custom_call.1} parent=1 // pred_check
      _
    $region43: #{tpu_custom_call.1} parent=1 // pred_check_branch
      %401 = sbr.rel (0) target = $region45
    $region44: #{tpu_custom_call.1} parent=1 // pred_region
      %402 = dma.done [#allocation3], 128
    $region45: #{tpu_custom_call.1} parent=1 // pred_fallthru
      _
    %403 = vsyncpa [#allocation3], 1

</llo_original>
